<compile_context>
chip_gen: v7x
topology: tpu7x:2x2x1
jax: 0.10.0
libtpu: 0.0.40
codegen_flags: <defaults>
</compile_context>

<pallas_src>
import functools

import jax
import jax.numpy as jnp
from jax.experimental import pallas as pl
from jax.experimental.pallas import tpu as pltpu

EPS = 1e-6


def _hash_keep_mask(seed_u32, row0_u32, shape, threshold_u32):
    """Counter-based uint32 hash -> boolean keep mask, tile-size invariant."""
    tm, h = shape
    row = jax.lax.broadcasted_iota(jnp.int32, (tm, h), 0).astype(jnp.uint32) + row0_u32
    col = jax.lax.broadcasted_iota(jnp.int32, (tm, h), 1).astype(jnp.uint32)
    v = (row * jnp.uint32(0x9E3779B1)) ^ (col * jnp.uint32(0x85EBCA77)) \
        ^ (seed_u32 * jnp.uint32(0x27D4EB2F))
    # splitmix32-style finalizer
    v = v ^ (v >> 16)
    v = v * jnp.uint32(0x7FEB352D)
    v = v ^ (v >> 15)
    v = v * jnp.uint32(0x846CA68B)
    v = v ^ (v >> 16)
    return v >= threshold_u32


def sublayer_connection_kernel(seed_ref, x_ref, w_ref, b_ref, g_ref, beta_ref, o_ref,
                               *, dropout_p, hidden, tm):
    x = x_ref[...].astype(jnp.float32)                      # (tm, H), f32 stats

    # ---- LayerNorm (pre-norm): a_2 * (x - mean) / (std + eps) + b_2, unbiased std ----
    mean = jnp.mean(x, axis=-1, keepdims=True)
    centered = x - mean
    var = jnp.sum(centered * centered, axis=-1, keepdims=True) / (hidden - 1)
    std = jnp.sqrt(var)
    inv = pl.reciprocal(std + EPS, approx=True)             # EUP slot, VPU stays free
    scale = g_ref[...].astype(jnp.float32) * inv            # gamma folded into row scale
    normed = centered * scale + beta_ref[...].astype(jnp.float32)

    # ---- Sublayer: Linear(H, H) on the MXU, bf16 operands + f32 accumulate ----
    y = jnp.dot(normed.astype(jnp.bfloat16), w_ref[...],
                preferred_element_type=jnp.float32)
    y = y + b_ref[...].astype(jnp.float32)

    # ---- Dropout (training-mode Bernoulli keep mask, scaled by 1/(1-p)) ----
    if dropout_p > 0.0:
        threshold = jnp.uint32(min(int(dropout_p * 4294967296.0), 0xFFFFFFFF))
        seed_u32 = seed_ref[0].astype(jnp.uint32)
        row0_u32 = (pl.program_id(0) * tm).astype(jnp.uint32)
        keep = _hash_keep_mask(seed_u32, row0_u32, (tm, hidden), threshold)
        y = jnp.where(keep, y * jnp.float32(1.0 / (1.0 - dropout_p)), 0.0)

    # ---- Residual ----
    o_ref[...] = (x + y).astype(o_ref.dtype)


def _pick_row_tile(m, preferred):
    """Largest multiple of 8 that divides m and is <= preferred."""
    best = 8
    d = 8
    cap = min(preferred, m)
    while d <= cap:
        if m % d == 0:
            best = d
        d += 8
    return best


def sublayer_connection(x, w, b, gamma, beta, seed, *, dropout_p, tm=256):
    """x: [B, S, H]; w: [H, H] (laid out for normed @ w); b/gamma/beta: [1, H]; seed: [1] int32."""
    B, S, H = x.shape
    M = B * S
    assert M % 8 == 0, "rows must be a multiple of 8"
    tm = _pick_row_tile(M, tm)
    x2 = x.reshape(M, H)
    w_bf = w.astype(jnp.bfloat16)                           # halve weight DMA / VMEM

    kernel = functools.partial(sublayer_connection_kernel,
                               dropout_p=float(dropout_p), hidden=H, tm=tm)

    # TODO(synk): for very large H (>~2K) tile the weight over output columns instead
    # of keeping the full (H, H) block resident (v7x VMEM budget).
    out = pl.pallas_call(
        kernel,
        out_shape=jax.ShapeDtypeStruct((M, H), x.dtype),
        grid_spec=pltpu.PrefetchScalarGridSpec(
            num_scalar_prefetch=1,                          # seed lands in SMEM
            grid=(M // tm,),
            in_specs=[
                pl.BlockSpec((tm, H), lambda i, seed: (i, 0)),   # x rows
                pl.BlockSpec((H, H), lambda i, seed: (0, 0)),    # linear weight (bf16)
                pl.BlockSpec((1, H), lambda i, seed: (0, 0)),    # linear bias
                pl.BlockSpec((1, H), lambda i, seed: (0, 0)),    # layernorm gamma (a_2)
                pl.BlockSpec((1, H), lambda i, seed: (0, 0)),    # layernorm beta  (b_2)
            ],
            out_specs=pl.BlockSpec((tm, H), lambda i, seed: (i, 0)),
        ),
        compiler_params=pltpu.CompilerParams(
            dimension_semantics=("parallel",),              # rows are independent -> both TCs on v7x
            vmem_limit_bytes=32 * 1024 * 1024,
        ),
    )(seed, x2, w_bf, b, gamma, beta)
    return out.reshape(B, S, H)


def reference_no_dropout(x, w, b, gamma, beta):
    """Pure-JAX reference of x + Linear(LayerNorm(x)) (dropout disabled, bf16 matmul like kernel)."""
    xf = x.astype(jnp.float32)
    mean = jnp.mean(xf, axis=-1, keepdims=True)
    c = xf - mean
    std = jnp.sqrt(jnp.sum(c * c, axis=-1, keepdims=True) / (x.shape[-1] - 1))
    normed = gamma[0] * c / (std + EPS) + beta[0]
    y = jnp.dot(normed.astype(jnp.bfloat16), w.astype(jnp.bfloat16),
                preferred_element_type=jnp.float32) + b[0]
    return (xf + y).astype(x.dtype)


if __name__ == "__main__":
    B, S, H = 2, 8, 128
    key = jax.random.PRNGKey(0)
    kx, kw, kb = jax.random.split(key, 3)

    x = jax.random.normal(kx, (B, S, H), dtype=jnp.float32)

    # Deterministic parameter init (synthetic, no checkpoint load):
    gamma = jnp.ones((1, H), dtype=jnp.float32)          # LayerNorm a_2
    beta = jnp.zeros((1, H), dtype=jnp.float32)          # LayerNorm b_2
    w = jax.random.normal(kw, (H, H), dtype=jnp.float32) * (1.0 / jnp.sqrt(H))
    b = jax.random.normal(kb, (1, H), dtype=jnp.float32) * 0.01
    seed = jnp.array([1234], dtype=jnp.int32)

    # Correctness check with dropout disabled (identity), then run with dropout active.
    out_nodrop = sublayer_connection(x, w, b, gamma, beta, seed, dropout_p=0.0)
    out_nodrop = jax.block_until_ready(out_nodrop)
    ref = reference_no_dropout(x, w, b, gamma, beta)
    assert jnp.allclose(out_nodrop, ref, atol=5e-2, rtol=5e-2), "mismatch vs reference"

    out = sublayer_connection(x, w, b, gamma, beta, seed, dropout_p=0.1)
    out = jax.block_until_ready(out)
    assert out.shape == (B, S, H)
    assert bool(jnp.all(jnp.isfinite(out)))

    print("KERNEL_OK")
</pallas_src>

<mosaic_0001>
module attributes {stable_mosaic.version = 11 : i64} {
  func.func @sublayer_connection_kernel(%arg0: i32, %arg1: memref<1xi32, #tpu.memory_space<smem>>, %arg2: memref<16x128xf32, #tpu.memory_space<vmem>>, %arg3: memref<128x128xbf16, #tpu.memory_space<vmem>>, %arg4: memref<1x128xf32, #tpu.memory_space<vmem>>, %arg5: memref<1x128xf32, #tpu.memory_space<vmem>>, %arg6: memref<1x128xf32, #tpu.memory_space<vmem>>, %arg7: memref<16x128xf32, #tpu.memory_space<vmem>>) attributes {dimension_semantics = [#tpu.dimension_semantics<parallel>], iteration_bounds = array<i64: 1>, scalar_prefetch = 1 : i64, scratch_operands = 0 : i64, tpu.core_type = #tpu.core_type<tc>, window_params = [{transform_indices = @transform_0, window_bounds = array<i64: 16, 128>}, {pipeline_mode = #tpu.pipeline_mode<synchronous>, transform_indices = @transform_1, window_bounds = array<i64: 128, 128>}, {pipeline_mode = #tpu.pipeline_mode<synchronous>, transform_indices = @transform_2, window_bounds = array<i64: 1, 128>}, {pipeline_mode = #tpu.pipeline_mode<synchronous>, transform_indices = @transform_3, window_bounds = array<i64: 1, 128>}, {pipeline_mode = #tpu.pipeline_mode<synchronous>, transform_indices = @transform_4, window_bounds = array<i64: 1, 128>}, {transform_indices = @transform_5, window_bounds = array<i64: 16, 128>}]} {
    %c0 = arith.constant 0 : index
    %c0_0 = arith.constant 0 : index
    %0 = vector.load %arg2[%c0, %c0_0] : memref<16x128xf32, #tpu.memory_space<vmem>>, vector<16x128xf32>
    %cst = arith.constant dense<0.000000e+00> : vector<16xf32>
    %1 = vector.multi_reduction <add>, %0, %cst [1] : vector<16x128xf32> to vector<16xf32>
    %2 = vector.shape_cast %1 : vector<16xf32> to vector<16x1xf32>
    %cst_1 = arith.constant 1.280000e+02 : f32
    %3 = vector.broadcast %cst_1 : f32 to vector<16x1xf32>
    %4 = arith.divf %2, %3 : vector<16x1xf32>
    %5 = vector.broadcast %4 : vector<16x1xf32> to vector<16x128xf32>
    %6 = arith.subf %0, %5 : vector<16x128xf32>
    %7 = arith.mulf %6, %6 : vector<16x128xf32>
    %cst_2 = arith.constant dense<0.000000e+00> : vector<16xf32>
    %8 = vector.multi_reduction <add>, %7, %cst_2 [1] : vector<16x128xf32> to vector<16xf32>
    %9 = vector.shape_cast %8 : vector<16xf32> to vector<16x1xf32>
    %cst_3 = arith.constant 1.270000e+02 : f32
    %10 = vector.broadcast %cst_3 : f32 to vector<16x1xf32>
    %11 = arith.divf %9, %10 : vector<16x1xf32>
    %12 = math.sqrt %11 : vector<16x1xf32>
    %cst_4 = arith.constant 9.99999997E-7 : f32
    %13 = vector.broadcast %cst_4 : f32 to vector<16x1xf32>
    %14 = arith.addf %12, %13 : vector<16x1xf32>
    %15 = tpu.reciprocal %14 {approx = true} : vector<16x1xf32> -> vector<16x1xf32>
    %c0_5 = arith.constant 0 : index
    %c0_6 = arith.constant 0 : index
    %16 = vector.load %arg5[%c0_5, %c0_6] : memref<1x128xf32, #tpu.memory_space<vmem>>, vector<1x128xf32>
    %17 = vector.broadcast %16 : vector<1x128xf32> to vector<16x128xf32>
    %18 = vector.broadcast %15 : vector<16x1xf32> to vector<16x128xf32>
    %19 = arith.mulf %17, %18 : vector<16x128xf32>
    %20 = arith.mulf %6, %19 : vector<16x128xf32>
    %c0_7 = arith.constant 0 : index
    %c0_8 = arith.constant 0 : index
    %21 = vector.load %arg6[%c0_7, %c0_8] : memref<1x128xf32, #tpu.memory_space<vmem>>, vector<1x128xf32>
    %22 = vector.broadcast %21 : vector<1x128xf32> to vector<16x128xf32>
    %23 = arith.addf %20, %22 : vector<16x128xf32>
    %24 = arith.truncf %23 : vector<16x128xf32> to vector<16x128xbf16>
    %c0_9 = arith.constant 0 : index
    %c0_10 = arith.constant 0 : index
    %25 = vector.load %arg3[%c0_9, %c0_10] : memref<128x128xbf16, #tpu.memory_space<vmem>>, vector<128x128xbf16>
    %cst_11 = arith.constant dense<0.000000e+00> : vector<16x128xf32>
    %26 = tpu.matmul %24, %25, %cst_11 {dimension_numbers = #tpu.dot_dimension_numbers<[1], [0], [0], [1], [0, 0, 1, 1], [], []>} : vector<16x128xbf16>, vector<128x128xbf16>, vector<16x128xf32> -> vector<16x128xf32>
    %c0_12 = arith.constant 0 : index
    %c0_13 = arith.constant 0 : index
    %27 = vector.load %arg4[%c0_12, %c0_13] : memref<1x128xf32, #tpu.memory_space<vmem>>, vector<1x128xf32>
    %28 = vector.broadcast %27 : vector<1x128xf32> to vector<16x128xf32>
    %29 = arith.addf %26, %28 : vector<16x128xf32>
    %30 = arith.addf %0, %29 : vector<16x128xf32>
    %c0_14 = arith.constant 0 : index
    %c0_15 = arith.constant 0 : index
    %31 = vector.load %arg7[%c0_14, %c0_15] : memref<16x128xf32, #tpu.memory_space<vmem>>, vector<16x128xf32>
    tpu.vector_store %arg7[%c0_14, %c0_15], %30 {strides = array<i32>} : memref<16x128xf32, #tpu.memory_space<vmem>>, vector<16x128xf32>,
    return
  }
  func.func @transform_0(%arg0: i32, %arg1: memref<1xi32, #tpu.memory_space<smem>>) -> (i32, i32) {
    %c0_i32 = arith.constant 0 : i32
    %c0_i32_0 = arith.constant 0 : i32
    return %arg0, %c0_i32 : i32, i32
  }
  func.func @transform_1(%arg0: i32, %arg1: memref<1xi32, #tpu.memory_space<smem>>) -> (i32, i32) {
    %c0_i32 = arith.constant 0 : i32
    %c0_i32_0 = arith.constant 0 : i32
    %c0_i32_1 = arith.constant 0 : i32
    return %c0_i32, %c0_i32_0 : i32, i32
  }
  func.func @transform_2(%arg0: i32, %arg1: memref<1xi32, #tpu.memory_space<smem>>) -> (i32, i32) {
    %c0_i32 = arith.constant 0 : i32
    %c0_i32_0 = arith.constant 0 : i32
    %c0_i32_1 = arith.constant 0 : i32
    return %c0_i32, %c0_i32_0 : i32, i32
  }
  func.func @transform_3(%arg0: i32, %arg1: memref<1xi32, #tpu.memory_space<smem>>) -> (i32, i32) {
    %c0_i32 = arith.constant 0 : i32
    %c0_i32_0 = arith.constant 0 : i32
    %c0_i32_1 = arith.constant 0 : i32
    return %c0_i32, %c0_i32_0 : i32, i32
  }
  func.func @transform_4(%arg0: i32, %arg1: memref<1xi32, #tpu.memory_space<smem>>) -> (i32, i32) {
    %c0_i32 = arith.constant 0 : i32
    %c0_i32_0 = arith.constant 0 : i32
    %c0_i32_1 = arith.constant 0 : i32
    return %c0_i32, %c0_i32_0 : i32, i32
  }
  func.func @transform_5(%arg0: i32, %arg1: memref<1xi32, #tpu.memory_space<smem>>) -> (i32, i32) {
    %c0_i32 = arith.constant 0 : i32
    %c0_i32_0 = arith.constant 0 : i32
    return %arg0, %c0_i32 : i32, i32
  }
}

</mosaic_0001>

<llo_original>
// kernel: tpu_custom_call.1
$region0: #{tpu_custom_call.1}
  #allocation0 [shape = 'u32[]', space=smem, size = 0x4, offset = 0x4, fixed_abs, tag = 'smem constant byte address 0x4 - core index']
  #allocation1 [shape = 'u32[144,128]{1,0:T(1,128)}', space=vmem, size = 0x12000, scoped, tag = 'internal scratch']
  #allocation2 [shape = 's32[1]{0}', space=sflag, size = 0x4, scoped, tag = 'scoped memory for tpu_custom_call.1']
  #allocation3 [shape = 's32[1]{0:T(128)S(6)}', space=smem, size = 0x200, scoped, tag = 'prefetched SMEM operand 0']
  %s0 = inlined_call_operand.<no memory space> [shape: s32[1], index: 0, kind: input, shape index: {}]
  %s1 = inlined_call_operand.hbm [shape: f32[16,128], index: 1, kind: input, shape index: {}]
  %s2 = inlined_call_operand.hbm [shape: bf16[128,128], index: 2, kind: input, shape index: {}]
  %s3 = inlined_call_operand.vmem [shape: f32[1,128], index: 3, kind: input, shape index: {}]
  %s4 = inlined_call_operand.vmem [shape: f32[1,128], index: 4, kind: input, shape index: {}]
  %s5 = inlined_call_operand.vmem [shape: f32[1,128], index: 5, kind: input, shape index: {}]
  %s6 = inlined_call_operand.hbm [shape: f32[16,128], index: 6, kind: output, shape index: {}]
  %s7 = sld [smem:[#allocation0]]
  $region38: #{tpu_custom_call.1} parent=0
    _
  %s9 = ssub.s32 1, %s7
  %s10 = scalar_select 0, %s9, %s7
  %11 = sst [smem:[#allocation3]] %s0
  $region1: #{tpu_custom_call.1} parent=0
    #allocation4 [shape = 'u8[8192]{0}', space=vmem, size = 0x2000, scoped, tag = 'input window, operand 1, single buffered']
    #allocation5 [shape = 's32[1]{0}', space=sflag, size = 0x4, scoped, tag = 'scoped memory for tpu_custom_call.1']
    #allocation6 [shape = 's32[1]{0}', space=sflag, size = 0x4, scoped, tag = 'scoped memory for tpu_custom_call.1']
    #allocation7 [shape = 'u8[32768]{0}', space=vmem, size = 0x8000, scoped, tag = 'input window, operand 2, single buffered']
    #allocation8 [shape = 's32[1]{0}', space=sflag, size = 0x4, scoped, tag = 'scoped memory for tpu_custom_call.1']
    #allocation9 [shape = 'u8[8192]{0}', space=vmem, size = 0x2000, scoped, tag = 'output window, operand 0, single buffered']
    %12 = vsyncpa [#allocation5], 0
    %13 = vsyncpa [#allocation8], 0
    %14 = vsyncpa [#allocation6], 0
    // Predicated region
    $region2: #{tpu_custom_call.1} parent=1 // pred_check
      _
    $region3: #{tpu_custom_call.1} parent=1 // pred_check_branch
      %16 = sbr.rel (0) target = $region5
    $region4: #{tpu_custom_call.1} parent=1 // pred_region
      %s18 = ssub.s32 256, 256
      %19 = vsyncadd [#allocation5], %s18
      %s20 = sshll.u32 [#allocation4], 4
      %s21 = int_to_ptr.vmem [resolvable:$true] %s20
      %26 = dma.hbm_to_vmem [thread:$0]  %s1, 256, %s21, [#allocation5], 128, 128, 8
    $region5: #{tpu_custom_call.1} parent=1 // pred_fallthru
      _
    // Predicated region
    $region6: #{tpu_custom_call.1} parent=1 // pred_check
      _
    $region7: #{tpu_custom_call.1} parent=1 // pred_check_branch
      %28 = sbr.rel (0) target = $region9
    $region8: #{tpu_custom_call.1} parent=1 // pred_region
      %s30 = ssub.s32 1024, 1024
      %31 = vsyncadd [#allocation8], %s30
      %s32 = sshll.u32 [#allocation7], 4
      %s33 = int_to_ptr.vmem [resolvable:$true] %s32
      %38 = dma.hbm_to_vmem [thread:$0]  %s2, 1024, %s33, [#allocation8], 64, 64, 4
    $region9: #{tpu_custom_call.1} parent=1 // pred_fallthru
      _
    // Predicated region
    $region10: #{tpu_custom_call.1} parent=1 // pred_check
      _
    $region11: #{tpu_custom_call.1} parent=1 // pred_check_branch
      %40 = sbr.rel (0) target = $region13
    $region12: #{tpu_custom_call.1} parent=1 // pred_region
      _
    $region13: #{tpu_custom_call.1} parent=1 // pred_fallthru
      _
    // Predicated region
    $region14: #{tpu_custom_call.1} parent=1 // pred_check
      _
    $region15: #{tpu_custom_call.1} parent=1 // pred_check_branch
      %42 = sbr.rel (0) target = $region17
    $region16: #{tpu_custom_call.1} parent=1 // pred_region
      _
    $region17: #{tpu_custom_call.1} parent=1 // pred_fallthru
      _
    // Predicated region
    $region18: #{tpu_custom_call.1} parent=1 // pred_check
      _
    $region19: #{tpu_custom_call.1} parent=1 // pred_check_branch
      %44 = sbr.rel (0) target = $region21
    $region20: #{tpu_custom_call.1} parent=1 // pred_region
      _
    $region21: #{tpu_custom_call.1} parent=1 // pred_fallthru
      _
    // Predicated region
    $region22: #{tpu_custom_call.1} parent=1 // pred_check
      _
    $region23: #{tpu_custom_call.1} parent=1 // pred_check_branch
      %46 = sbr.rel (0) target = $region25
    $region24: #{tpu_custom_call.1} parent=1 // pred_region
      %47 = dma.done [#allocation5], 256
    $region25: #{tpu_custom_call.1} parent=1 // pred_fallthru
      _
    // Predicated region
    $region26: #{tpu_custom_call.1} parent=1 // pred_check
      _
    $region27: #{tpu_custom_call.1} parent=1 // pred_check_branch
      %49 = sbr.rel (0) target = $region29
    $region28: #{tpu_custom_call.1} parent=1 // pred_region
      %50 = dma.done [#allocation8], 1024
    $region29: #{tpu_custom_call.1} parent=1 // pred_fallthru
      _
    %v52 = vld [vmem:[#allocation4] sm:$0xff]
    %v53 = vld [vmem:[#allocation4 + $0x8] sm:$0xff]
    %54 = vadd.xlane.f32.xlu0 %v52
    %v55 = vpop.xlane.xlu0 %54
    %56 = vadd.xlane.f32.xlu0 %v53
    %v57 = vpop.xlane.xlu0 %56
    %v58 = vrcp.pop 128.0
    %v59 = vmul.f32 %v55, %v58
    %v60 = vmul.f32 %v57, %v58
    %v61 = vsub.f32 %v52, %v59
    %v62 = vsub.f32 %v53, %v60
    %v63 = vmul.f32 %v61, %v61
    %v64 = vmul.f32 %v62, %v62
    %65 = vadd.xlane.f32.xlu0 %v63
    %v66 = vpop.xlane.xlu0 %65
    %67 = vadd.xlane.f32.xlu0 %v64
    %v68 = vpop.xlane.xlu0 %67
    %v69 = vrcp.pop 127.0
    %v70 = vmul.f32 %v66, %v69
    %v71 = vmul.f32 %v68, %v69
    %v72 = vrsqrt.pop %v70
    %v73 = vmul.f32 %v70, %v72
    %vm74 = vcmp.eq.f32.partialorder %v70, inf
    %v75 = vsel %vm74, %v70, %v73
    %vm76 = vcmp.eq.f32.partialorder %v70, 0.0
    %v77 = vand.u32 %v70, 2147483648
    %v78 = vsel %vm76, %v77, %v75
    %v79 = vrsqrt.pop %v71
    %v80 = vmul.f32 %v71, %v79
    %vm81 = vcmp.eq.f32.partialorder %v71, inf
    %v82 = vsel %vm81, %v71, %v80
    %vm83 = vcmp.eq.f32.partialorder %v71, 0.0
    %v84 = vand.u32 %v71, 2147483648
    %v85 = vsel %vm83, %v84, %v82
    %v86 = vadd.f32 %v78, 1e-06
    %v87 = vadd.f32 %v85, 1e-06
    %v88 = vrcp.pop %v86
    %v89 = vrcp.pop %v87
    %v90 = vld [vmem:[%s4] sm:$0x1]
    %v92 = vlaneseq
    %v93 = vshrl.u32 %v92, 7
    %v94 = vsub.s32 0, %v93
    %v95 = vrot.slane %v90, %v94
    %v97 = vmul.f32 %v95, %v88
    %v98 = vmul.f32 %v95, %v89
    %v99 = vmul.f32 %v61, %v97
    %v100 = vmul.f32 %v62, %v98
    %v101 = vld [vmem:[%s5] sm:$0x1]
    %v103 = vlaneseq
    %v104 = vshrl.u32 %v103, 7
    %v105 = vsub.s32 0, %v104
    %v106 = vrot.slane %v101, %v105
    %v108 = vadd.f32 %v99, %v106
    %v109 = vadd.f32 %v100, %v106
    %v110 = vpack.c.bf16 %v109, %v108
    %v111 = vld [vmem:[#allocation7] sm:$0xf]
    %v112 = vld [vmem:[#allocation7 + $0x4] sm:$0xf]
    %v113 = vld [vmem:[#allocation7 + $0x8] sm:$0xf]
    %v114 = vld [vmem:[#allocation7 + $0xc] sm:$0xf]
    %v115 = vld [vmem:[#allocation7 + $0x10] sm:$0xf]
    %v116 = vld [vmem:[#allocation7 + $0x14] sm:$0xf]
    %v117 = vld [vmem:[#allocation7 + $0x18] sm:$0xf]
    %v118 = vld [vmem:[#allocation7 + $0x1c] sm:$0xf]
    %v119 = vld [vmem:[#allocation7 + $0x20] sm:$0xf]
    %v120 = vld [vmem:[#allocation7 + $0x24] sm:$0xf]
    %v121 = vld [vmem:[#allocation7 + $0x28] sm:$0xf]
    %v122 = vld [vmem:[#allocation7 + $0x2c] sm:$0xf]
    %v123 = vld [vmem:[#allocation7 + $0x30] sm:$0xf]
    %v124 = vld [vmem:[#allocation7 + $0x34] sm:$0xf]
    %v125 = vld [vmem:[#allocation7 + $0x38] sm:$0xf]
    %v126 = vld [vmem:[#allocation7 + $0x3c] sm:$0xf]
    %v127 = vld [vmem:[%s3] sm:$0x1]
    %v129 = vlaneseq
    %v130 = vshrl.u32 %v129, 7
    %v131 = vsub.s32 0, %v130
    %v132 = vrot.slane %v127, %v131
    %v150 = vunpack.c.l.b16 %v111
    %v151 = vunpack.c.l.b16 %v112
    %v152 = vunpack.c.l.b16 %v113
    %v153 = vunpack.c.l.b16 %v114
    %v154 = vunpack.c.l.b16 %v115
    %v155 = vunpack.c.l.b16 %v116
    %v156 = vunpack.c.l.b16 %v117
    %v157 = vunpack.c.l.b16 %v118
    %v158 = vunpack.c.l.b16 %v119
    %v159 = vunpack.c.l.b16 %v120
    %v160 = vunpack.c.l.b16 %v121
    %v161 = vunpack.c.l.b16 %v122
    %v162 = vunpack.c.l.b16 %v123
    %v163 = vunpack.c.l.b16 %v124
    %v164 = vunpack.c.l.b16 %v125
    %v165 = vunpack.c.l.b16 %v126
    %v166 = vpack.c.b16 %v151, %v150
    %v167 = vpack.c.b16 %v153, %v152
    %v168 = vpack.c.b16 %v155, %v154
    %v169 = vpack.c.b16 %v157, %v156
    %v170 = vpack.c.b16 %v159, %v158
    %v171 = vpack.c.b16 %v161, %v160
    %v172 = vpack.c.b16 %v163, %v162
    %v173 = vpack.c.b16 %v165, %v164
    %182 = vmatprep.subr.bf16.mxu0 0
    %183 = vmatpush1.bf16.msra.mxu0 %v166
    %184 = vmatprep.subr.bf16.mxu0 0
    %185 = vmatpush1.bf16.msra.mxu0 %v167
    %186 = vmatprep.subr.bf16.mxu0 0
    %187 = vmatpush1.bf16.msra.mxu0 %v168
    %188 = vmatprep.subr.bf16.mxu0 0
    %189 = vmatpush1.bf16.msra.mxu0 %v169
    %190 = vmatprep.subr.bf16.mxu0 0
    %191 = vmatpush1.bf16.msra.mxu0 %v170
    %192 = vmatprep.subr.bf16.mxu0 0
    %193 = vmatpush1.bf16.msra.mxu0 %v171
    %194 = vmatprep.subr.bf16.mxu0 0
    %195 = vmatpush1.bf16.msra.mxu0 %v172
    %196 = vmatprep.subr.bf16.mxu0 0
    %197 = vmatpush1.bf16.msra.mxu0 %v173
    %198 = vmatprep.subr.bf16.mxu0 0
    %199 = vmatpush1.bf16.msra.mxu0 0
    %200 = vmatprep.subr.bf16.mxu0 0
    %201 = vmatpush1.bf16.msra.mxu0 0
    %202 = vmatprep.subr.bf16.mxu0 0
    %203 = vmatpush1.bf16.msra.mxu0 0
    %204 = vmatprep.subr.bf16.mxu0 0
    %205 = vmatpush1.bf16.msra.mxu0 0
    %206 = vmatprep.subr.bf16.mxu0 0
    %207 = vmatpush1.bf16.msra.mxu0 0
    %208 = vmatprep.subr.bf16.mxu0 0
    %209 = vmatpush1.bf16.msra.mxu0 0
    %210 = vmatprep.subr.bf16.mxu0 0
    %211 = vmatpush1.bf16.msra.mxu0 0
    %212 = vmatprep.subr.bf16.mxu0 0
    %213 = vmatpush1.bf16.msra.mxu0 0
    %214 = vmatprep.mubr.bf16.mxu0 0
    %215 = vmatmul.mubr.bf16.gmra.mrb[0].mxu0 %v110
    %v216 = vpop.f32.mrb[0].mxu0
    %v217 = vadd.f32 %v132, %v216
    %v218 = vpop.f32.mrb[0].mxu0
    %v219 = vpop.f32.mrb[0].mxu0
    %v220 = vadd.f32 %v132, %v219
    %v221 = vpop.f32.mrb[0].mxu0
    %222 = vdwg.mxu0
    %v223 = vadd.f32 %v52, %v217
    %v224 = vadd.f32 %v53, %v220
    %225 = vst [vmem:[#allocation9] sm:$0xff] %v223
    %226 = vst [vmem:[#allocation9 + $0x8] sm:$0xff] %v224
    // Predicated region
    $region30: #{tpu_custom_call.1} parent=1 // pred_check
      _
    $region31: #{tpu_custom_call.1} parent=1 // pred_check_branch
      %228 = sbr.rel (0) target = $region33
    $region32: #{tpu_custom_call.1} parent=1 // pred_region
      %s230 = ssub.s32 256, 256
      %231 = vsyncadd [#allocation6], %s230
      %s232 = sshll.u32 [#allocation9], 4
      %s233 = int_to_ptr.vmem [resolvable:$true] %s232
      %238 = dma.vmem_to_hbm [thread:$0]  %s233, 256, %s6, [#allocation6], 128, 128, 8
    $region33: #{tpu_custom_call.1} parent=1 // pred_fallthru
      _
    // Predicated region
    $region34: #{tpu_custom_call.1} parent=1 // pred_check
      _
    $region35: #{tpu_custom_call.1} parent=1 // pred_check_branch
      %240 = sbr.rel (0) target = $region37
    $region36: #{tpu_custom_call.1} parent=1 // pred_region
      %241 = dma.done [#allocation6], 256
    $region37: #{tpu_custom_call.1} parent=1 // pred_fallthru
      _
    %242 = vsyncpa [#allocation5], 1
    %243 = vsyncpa [#allocation8], 1
    %244 = vsyncpa [#allocation6], 1

</llo_original>
